<compile_context>
chip_gen: v5e
topology: v5e:2x2
jax: 0.10.0
libtpu: 0.0.40
codegen_flags: <defaults>
</compile_context>

<pallas_src>
import jax
import jax.numpy as jnp
import numpy as np
from jax.experimental import pallas as pl
from jax.experimental.pallas import tpu as pltpu


# ----------------------------------------------------------------------------------- #
# Kernel: h = relu(c @ W_c + s @ W_s + b1); out = h @ W2 + b2
# ----------------------------------------------------------------------------------- #
def style_attention_kernel(c_ref, s_ref, wc_ref, ws_ref, b1_ref, w2_ref, b2_ref,
                           out_ref):
    f32 = jnp.float32
    h = (jnp.dot(c_ref[...], wc_ref[...], preferred_element_type=f32)
         + jnp.dot(s_ref[...], ws_ref[...], preferred_element_type=f32)
         + b1_ref[...])
    h = jnp.maximum(h, 0.0)                                    # bias add + ReLU in f32
    out = jnp.dot(h.astype(w2_ref.dtype), w2_ref[...], preferred_element_type=f32)
    out = out + b2_ref[...]
    out_ref[...] = out.astype(out_ref.dtype)


# ----------------------------------------------------------------------------------- #
# Host-side weight folding (static weights, eval-mode algebraic identity).
# ----------------------------------------------------------------------------------- #
def fold_params(p, compute_dtype=jnp.float32):
    E = p["w_f2"].shape[0]
    w_f1_top = p["w_f1"][:E, :]          # multiplies content_proj
    w_f1_bot = p["w_f1"][E:, :]          # multiplies attn_out

    # attn_out = (style @ w_sp + b_sp) @ (w_v @ w_o) + (b_v @ w_o + b_o)
    w_vo = p["w_v"] @ p["w_o"]
    b_vo = p["b_v"][0] @ p["w_o"] + p["b_o"][0]

    W_c = p["w_cp"] @ w_f1_top                                # (content_dim, E)
    W_s = p["w_sp"] @ (w_vo @ w_f1_bot)                       # (style_dim,   E)
    b1 = (p["b_cp"][0] @ w_f1_top
          + (p["b_sp"][0] @ w_vo + b_vo) @ w_f1_bot
          + p["b_f1"][0])

    return (W_c.astype(compute_dtype),
            W_s.astype(compute_dtype),
            b1[None, :].astype(jnp.float32),
            p["w_f2"].astype(compute_dtype),
            p["b_f2"].astype(jnp.float32))


# ----------------------------------------------------------------------------------- #
# Wrapper
# ----------------------------------------------------------------------------------- #
def style_attention_forward(style, content, params, *, batch_tile=1024,
                            compute_dtype=jnp.float32, out_dtype=None):
    B, S = style.shape
    _, C = content.shape
    E = params["w_f2"].shape[0]
    out_dtype = style.dtype if out_dtype is None else out_dtype

    wc, ws, b1, w2, b2 = fold_params(params, compute_dtype)

    # Cast activation streams to the MXU operand dtype *before* the kernel so the
    # dominant HBM read is halved on the bf16 path (accumulation stays f32 in-kernel).
    content = content.astype(compute_dtype)
    style = style.astype(compute_dtype)

    # Large batch tiles amortize the ~0.35 us / grid-step overhead; cap at ceil(B/2)
    # so a "parallel" grid of >= 2 steps lets v7x shard across both TensorCores.
    tile = min(batch_tile, B)
    if B > 8:
        tile = min(tile, -(-B // 2))
    tile = max(8, ((tile + 7) // 8) * 8)

    Bp = ((B + tile - 1) // tile) * tile
    if Bp != B:                                               # pad only when ragged
        content = jnp.pad(content, ((0, Bp - B), (0, 0)))
        style = jnp.pad(style, ((0, Bp - B), (0, 0)))

    def full_spec(a):
        return pl.BlockSpec(a.shape, lambda i: (0, 0))        # grid-invariant weights

    out = pl.pallas_call(
        style_attention_kernel,
        out_shape=jax.ShapeDtypeStruct((Bp, E), out_dtype),
        grid_spec=pltpu.PrefetchScalarGridSpec(
            num_scalar_prefetch=0,
            grid=(Bp // tile,),
            in_specs=[pl.BlockSpec((tile, C), lambda i: (i, 0)),   # content stream
                      pl.BlockSpec((tile, S), lambda i: (i, 0)),   # style stream
                      full_spec(wc), full_spec(ws), full_spec(b1),
                      full_spec(w2), full_spec(b2)],
            out_specs=pl.BlockSpec((tile, E), lambda i: (i, 0)),
        ),
        compiler_params=pltpu.CompilerParams(dimension_semantics=("parallel",)),
    )(content, style, wc, ws, b1, w2, b2)
    return out if Bp == B else out[:B]


# ----------------------------------------------------------------------------------- #
# Parameters (pre-transposed (in, out) layout). q/k in-proj weights of the MHA are
# intentionally not materialized: they cannot influence the seq_len==1 forward.
# ----------------------------------------------------------------------------------- #
_WEIGHT_ORDER = ("w_sp", "b_sp", "w_cp", "b_cp",
                 "w_v", "b_v", "w_o", "b_o",
                 "w_f1", "b_f1", "w_f2", "b_f2")


def init_params(key, style_dim, content_dim, output_dim):
    E = output_dim
    shapes = {
        "w_sp": (style_dim, E), "b_sp": (1, E),
        "w_cp": (content_dim, E), "b_cp": (1, E),
        "w_v": (E, E), "b_v": (1, E),
        "w_o": (E, E), "b_o": (1, E),
        "w_f1": (2 * E, E), "b_f1": (1, E),
        "w_f2": (E, E), "b_f2": (1, E),
    }
    params = {}
    for name in _WEIGHT_ORDER:
        key, sub = jax.random.split(key)
        params[name] = 0.05 * jax.random.normal(sub, shapes[name], jnp.float32)
    return params


def reference_forward(style, content, p):
    """Pure-JAX reference mirroring the PyTorch forward (eval mode), unfused."""
    sp = style @ p["w_sp"] + p["b_sp"][0]
    cp = content @ p["w_cp"] + p["b_cp"][0]
    # seq_len == 1 => attention weights == 1 => attn_output = out_proj(v_proj(sp))
    v = sp @ p["w_v"] + p["b_v"][0]
    attn = v @ p["w_o"] + p["b_o"][0]
    fused = jnp.concatenate([cp, attn], axis=1)
    h = jax.nn.relu(fused @ p["w_f1"] + p["b_f1"][0])
    return h @ p["w_f2"] + p["b_f2"][0]


if __name__ == "__main__":
    B, STYLE_DIM, CONTENT_DIM, OUTPUT_DIM = 8, 32, 48, 128   # OUTPUT_DIM % 8 heads == 0

    key = jax.random.PRNGKey(0)
    k_style, k_content, k_params = jax.random.split(key, 3)
    style_features = jax.random.normal(k_style, (B, STYLE_DIM), jnp.float32)
    content_features = jax.random.normal(k_content, (B, CONTENT_DIM), jnp.float32)
    params = init_params(k_params, STYLE_DIM, CONTENT_DIM, OUTPUT_DIM)

    ref = reference_forward(style_features, content_features, params)

    # f32 path (strict numerical parity; folding only reassociates f32 sums)
    out = jax.block_until_ready(
        style_attention_forward(style_features, content_features, params))
    np.testing.assert_allclose(np.asarray(out), np.asarray(ref), rtol=1e-5, atol=1e-5)

    # bf16 MXU-operand path (all generations; accumulate f32), loose tolerance.
    out_bf16 = jax.block_until_ready(
        style_attention_forward(style_features, content_features, params,
                                compute_dtype=jnp.bfloat16))
    np.testing.assert_allclose(np.asarray(out_bf16), np.asarray(ref), rtol=3e-2, atol=3e-2)

    # Multi-tile grid (>=2 steps for v7x) + ragged-batch padding path.
    B2 = 50
    k2s, k2c = jax.random.split(jax.random.PRNGKey(1))
    style2 = jax.random.normal(k2s, (B2, STYLE_DIM), jnp.float32)
    content2 = jax.random.normal(k2c, (B2, CONTENT_DIM), jnp.float32)
    out2 = jax.block_until_ready(
        style_attention_forward(style2, content2, params, batch_tile=16))
    ref2 = reference_forward(style2, content2, params)
    np.testing.assert_allclose(np.asarray(out2), np.asarray(ref2), rtol=1e-5, atol=1e-5)

    print("KERNEL_OK")
</pallas_src>

<mosaic_0001>
module attributes {stable_mosaic.version = 11 : i64} {
  func.func @style_attention_kernel(%arg0: i32, %arg1: memref<8x48xf32, #tpu.memory_space<vmem>>, %arg2: memref<8x32xf32, #tpu.memory_space<vmem>>, %arg3: memref<48x128xf32, #tpu.memory_space<vmem>>, %arg4: memref<32x128xf32, #tpu.memory_space<vmem>>, %arg5: memref<1x128xf32, #tpu.memory_space<vmem>>, %arg6: memref<128x128xf32, #tpu.memory_space<vmem>>, %arg7: memref<1x128xf32, #tpu.memory_space<vmem>>, %arg8: memref<8x128xf32, #tpu.memory_space<vmem>>) attributes {dimension_semantics = [#tpu.dimension_semantics<parallel>], iteration_bounds = array<i64: 1>, scalar_prefetch = 0 : i64, scratch_operands = 0 : i64, tpu.core_type = #tpu.core_type<tc>, window_params = [{transform_indices = @transform_0, window_bounds = array<i64: 8, 48>}, {transform_indices = @transform_1, window_bounds = array<i64: 8, 32>}, {pipeline_mode = #tpu.pipeline_mode<synchronous>, transform_indices = @transform_2, window_bounds = array<i64: 48, 128>}, {pipeline_mode = #tpu.pipeline_mode<synchronous>, transform_indices = @transform_3, window_bounds = array<i64: 32, 128>}, {pipeline_mode = #tpu.pipeline_mode<synchronous>, transform_indices = @transform_4, window_bounds = array<i64: 1, 128>}, {pipeline_mode = #tpu.pipeline_mode<synchronous>, transform_indices = @transform_5, window_bounds = array<i64: 128, 128>}, {pipeline_mode = #tpu.pipeline_mode<synchronous>, transform_indices = @transform_6, window_bounds = array<i64: 1, 128>}, {transform_indices = @transform_7, window_bounds = array<i64: 8, 128>}]} {
    %c0 = arith.constant 0 : index
    %c0_0 = arith.constant 0 : index
    %0 = vector.load %arg1[%c0, %c0_0] : memref<8x48xf32, #tpu.memory_space<vmem>>, vector<8x48xf32>
    %c0_1 = arith.constant 0 : index
    %c0_2 = arith.constant 0 : index
    %1 = vector.load %arg3[%c0_1, %c0_2] : memref<48x128xf32, #tpu.memory_space<vmem>>, vector<48x128xf32>
    %cst = arith.constant dense<0.000000e+00> : vector<8x128xf32>
    %2 = tpu.matmul %0, %1, %cst {dimension_numbers = #tpu.dot_dimension_numbers<[1], [0], [0], [1], [0, 0, 1, 1], [], []>} : vector<8x48xf32>, vector<48x128xf32>, vector<8x128xf32> -> vector<8x128xf32>
    %c0_3 = arith.constant 0 : index
    %c0_4 = arith.constant 0 : index
    %3 = vector.load %arg2[%c0_3, %c0_4] : memref<8x32xf32, #tpu.memory_space<vmem>>, vector<8x32xf32>
    %c0_5 = arith.constant 0 : index
    %c0_6 = arith.constant 0 : index
    %4 = vector.load %arg4[%c0_5, %c0_6] : memref<32x128xf32, #tpu.memory_space<vmem>>, vector<32x128xf32>
    %cst_7 = arith.constant dense<0.000000e+00> : vector<8x128xf32>
    %5 = tpu.matmul %3, %4, %cst_7 {dimension_numbers = #tpu.dot_dimension_numbers<[1], [0], [0], [1], [0, 0, 1, 1], [], []>} : vector<8x32xf32>, vector<32x128xf32>, vector<8x128xf32> -> vector<8x128xf32>
    %6 = arith.addf %2, %5 : vector<8x128xf32>
    %c0_8 = arith.constant 0 : index
    %c0_9 = arith.constant 0 : index
    %7 = vector.load %arg5[%c0_8, %c0_9] : memref<1x128xf32, #tpu.memory_space<vmem>>, vector<1x128xf32>
    %8 = vector.broadcast %7 : vector<1x128xf32> to vector<8x128xf32>
    %9 = arith.addf %6, %8 : vector<8x128xf32>
    %cst_10 = arith.constant 0.000000e+00 : f32
    %10 = vector.broadcast %cst_10 : f32 to vector<8x128xf32>
    %11 = arith.maximumf %9, %10 : vector<8x128xf32>
    %c0_11 = arith.constant 0 : index
    %c0_12 = arith.constant 0 : index
    %12 = vector.load %arg6[%c0_11, %c0_12] : memref<128x128xf32, #tpu.memory_space<vmem>>, vector<128x128xf32>
    %cst_13 = arith.constant dense<0.000000e+00> : vector<8x128xf32>
    %13 = tpu.matmul %11, %12, %cst_13 {dimension_numbers = #tpu.dot_dimension_numbers<[1], [0], [0], [1], [0, 0, 1, 1], [], []>} : vector<8x128xf32>, vector<128x128xf32>, vector<8x128xf32> -> vector<8x128xf32>
    %c0_14 = arith.constant 0 : index
    %c0_15 = arith.constant 0 : index
    %14 = vector.load %arg7[%c0_14, %c0_15] : memref<1x128xf32, #tpu.memory_space<vmem>>, vector<1x128xf32>
    %15 = vector.broadcast %14 : vector<1x128xf32> to vector<8x128xf32>
    %16 = arith.addf %13, %15 : vector<8x128xf32>
    %c0_16 = arith.constant 0 : index
    %c0_17 = arith.constant 0 : index
    %17 = vector.load %arg8[%c0_16, %c0_17] : memref<8x128xf32, #tpu.memory_space<vmem>>, vector<8x128xf32>
    tpu.vector_store %arg8[%c0_16, %c0_17], %16 {strides = array<i32>} : memref<8x128xf32, #tpu.memory_space<vmem>>, vector<8x128xf32>,
    return
  }
  func.func @transform_0(%arg0: i32) -> (i32, i32) {
    %c0_i32 = arith.constant 0 : i32
    %c0_i32_0 = arith.constant 0 : i32
    return %arg0, %c0_i32 : i32, i32
  }
  func.func @transform_1(%arg0: i32) -> (i32, i32) {
    %c0_i32 = arith.constant 0 : i32
    %c0_i32_0 = arith.constant 0 : i32
    return %arg0, %c0_i32 : i32, i32
  }
  func.func @transform_2(%arg0: i32) -> (i32, i32) {
    %c0_i32 = arith.constant 0 : i32
    %c0_i32_0 = arith.constant 0 : i32
    %c0_i32_1 = arith.constant 0 : i32
    return %c0_i32, %c0_i32_0 : i32, i32
  }
  func.func @transform_3(%arg0: i32) -> (i32, i32) {
    %c0_i32 = arith.constant 0 : i32
    %c0_i32_0 = arith.constant 0 : i32
    %c0_i32_1 = arith.constant 0 : i32
    return %c0_i32, %c0_i32_0 : i32, i32
  }
  func.func @transform_4(%arg0: i32) -> (i32, i32) {
    %c0_i32 = arith.constant 0 : i32
    %c0_i32_0 = arith.constant 0 : i32
    %c0_i32_1 = arith.constant 0 : i32
    return %c0_i32, %c0_i32_0 : i32, i32
  }
  func.func @transform_5(%arg0: i32) -> (i32, i32) {
    %c0_i32 = arith.constant 0 : i32
    %c0_i32_0 = arith.constant 0 : i32
    %c0_i32_1 = arith.constant 0 : i32
    return %c0_i32, %c0_i32_0 : i32, i32
  }
  func.func @transform_6(%arg0: i32) -> (i32, i32) {
    %c0_i32 = arith.constant 0 : i32
    %c0_i32_0 = arith.constant 0 : i32
    %c0_i32_1 = arith.constant 0 : i32
    return %c0_i32, %c0_i32_0 : i32, i32
  }
  func.func @transform_7(%arg0: i32) -> (i32, i32) {
    %c0_i32 = arith.constant 0 : i32
    %c0_i32_0 = arith.constant 0 : i32
    return %arg0, %c0_i32 : i32, i32
  }
}

</mosaic_0001>

<llo_original>
// kernel: tpu_custom_call.1
$region0: #{tpu_custom_call.1}
  #allocation0 [shape = 'u32[]', space=smem, size = 0x4, offset = 0x4, fixed_abs, tag = 'smem constant byte address 0x4 - core index']
  #allocation1 [shape = 'u32[72,128]{1,0:T(1,128)}', space=vmem, size = 0x9000, scoped, tag = 'internal scratch']
  %s0 = inlined_call_operand.hbm [shape: f32[8,48], index: 0, kind: input, shape index: {}]
  %s1 = inlined_call_operand.hbm [shape: f32[8,32], index: 1, kind: input, shape index: {}]
  %s2 = inlined_call_operand.hbm [shape: f32[48,128], index: 2, kind: input, shape index: {}]
  %s3 = inlined_call_operand.hbm [shape: f32[32,128], index: 3, kind: input, shape index: {}]
  %s4 = inlined_call_operand.vmem [shape: f32[1,128], index: 4, kind: input, shape index: {}]
  %s5 = inlined_call_operand.hbm [shape: f32[128,128], index: 5, kind: input, shape index: {}]
  %s6 = inlined_call_operand.vmem [shape: f32[1,128], index: 6, kind: input, shape index: {}]
  %s7 = inlined_call_operand.hbm [shape: f32[8,128], index: 7, kind: output, shape index: {}]
  %s8 = sld [smem:[#allocation0]]
  $region58: #{tpu_custom_call.1} parent=0
    _
  %s10 = ssub.s32 1, %s8
  %s11 = scalar_select 0, %s10, %s8
  $region1: #{tpu_custom_call.1} parent=0
    #allocation2 [shape = 'u8[4096]{0}', space=vmem, size = 0x1000, scoped, tag = 'input window, operand 0, single buffered']
    #allocation3 [shape = 's32[1]{0}', space=sflag, size = 0x4, scoped, tag = 'scoped memory for tpu_custom_call.1']
    #allocation4 [shape = 's32[1]{0}', space=sflag, size = 0x4, scoped, tag = 'scoped memory for tpu_custom_call.1']
    #allocation5 [shape = 'u8[4096]{0}', space=vmem, size = 0x1000, scoped, tag = 'input window, operand 1, single buffered']
    #allocation6 [shape = 's32[1]{0}', space=sflag, size = 0x4, scoped, tag = 'scoped memory for tpu_custom_call.1']
    #allocation7 [shape = 'u8[24576]{0}', space=vmem, size = 0x6000, scoped, tag = 'input window, operand 2, single buffered']
    #allocation8 [shape = 'u8[16384]{0}', space=vmem, size = 0x4000, scoped, tag = 'input window, operand 3, single buffered']
    #allocation9 [shape = 's32[1]{0}', space=sflag, size = 0x4, scoped, tag = 'scoped memory for tpu_custom_call.1']
    #allocation10 [shape = 'u8[65536]{0}', space=vmem, size = 0x10000, scoped, tag = 'input window, operand 5, single buffered']
    #allocation11 [shape = 'u8[4096]{0}', space=vmem, size = 0x1000, scoped, tag = 'output window, operand 0, single buffered']
    %12 = vsyncpa [#allocation3], 0
    %13 = vsyncpa [#allocation6], 0
    %14 = vsyncpa [#allocation9], 0
    %15 = vsyncpa [#allocation4], 0
    // Predicated region
    $region2: #{tpu_custom_call.1} parent=1 // pred_check
      _
    $region3: #{tpu_custom_call.1} parent=1 // pred_check_branch
      %17 = sbr.rel (0) target = $region5
    $region4: #{tpu_custom_call.1} parent=1 // pred_region
      %19 = vsyncadd [#allocation3], 0
      %s21 = sshll.u32 %s0, 4
      %s22 = int_to_ptr.hbm [resolvable:$true] %s21
      %s23 = sshll.u32 [#allocation2], 4
      %s24 = int_to_ptr.vmem [resolvable:$true] %s23
      %26 = dma.hbm_to_vmem [thread:$0]  %s22, 128, %s24, [#allocation3]
    $region5: #{tpu_custom_call.1} parent=1 // pred_fallthru
      _
    // Predicated region
    $region6: #{tpu_custom_call.1} parent=1 // pred_check
      _
    $region7: #{tpu_custom_call.1} parent=1 // pred_check_branch
      %28 = sbr.rel (0) target = $region9
    $region8: #{tpu_custom_call.1} parent=1 // pred_region
      %30 = vsyncadd [#allocation6], 0
      %s32 = sshll.u32 %s1, 4
      %s33 = int_to_ptr.hbm [resolvable:$true] %s32
      %s34 = sshll.u32 [#allocation5], 4
      %s35 = int_to_ptr.vmem [resolvable:$true] %s34
      %37 = dma.hbm_to_vmem [thread:$0]  %s33, 128, %s35, [#allocation6]
    $region9: #{tpu_custom_call.1} parent=1 // pred_fallthru
      _
    // Predicated region
    $region10: #{tpu_custom_call.1} parent=1 // pred_check
      _
    $region11: #{tpu_custom_call.1} parent=1 // pred_check_branch
      %39 = sbr.rel (0) target = $region13
    $region12: #{tpu_custom_call.1} parent=1 // pred_region
      %41 = vsyncadd [#allocation6], 0
      %s42 = sshll.u32 %s2, 4
      %s43 = int_to_ptr.hbm [resolvable:$true] %s42
      %s44 = sshll.u32 [#allocation7], 4
      %s45 = int_to_ptr.vmem [resolvable:$true] %s44
      %50 = dma.hbm_to_vmem [thread:$0]  %s43, 768, %s45, [#allocation6], 128, 128, 8
    $region13: #{tpu_custom_call.1} parent=1 // pred_fallthru
      _
    // Predicated region
    $region14: #{tpu_custom_call.1} parent=1 // pred_check
      _
    $region15: #{tpu_custom_call.1} parent=1 // pred_check_branch
      %52 = sbr.rel (0) target = $region17
    $region16: #{tpu_custom_call.1} parent=1 // pred_region
      %54 = vsyncadd [#allocation9], 0
      %s55 = sshll.u32 %s3, 4
      %s56 = int_to_ptr.hbm [resolvable:$true] %s55
      %s57 = sshll.u32 [#allocation8], 4
      %s58 = int_to_ptr.vmem [resolvable:$true] %s57
      %63 = dma.hbm_to_vmem [thread:$0]  %s56, 512, %s58, [#allocation9], 128, 128, 8
    $region17: #{tpu_custom_call.1} parent=1 // pred_fallthru
      _
    // Predicated region
    $region18: #{tpu_custom_call.1} parent=1 // pred_check
      _
    $region19: #{tpu_custom_call.1} parent=1 // pred_check_branch
      %65 = sbr.rel (0) target = $region21
    $region20: #{tpu_custom_call.1} parent=1 // pred_region
      _
    $region21: #{tpu_custom_call.1} parent=1 // pred_fallthru
      _
    // Predicated region
    $region22: #{tpu_custom_call.1} parent=1 // pred_check
      _
    $region23: #{tpu_custom_call.1} parent=1 // pred_check_branch
      %67 = sbr.rel (0) target = $region25
    $region24: #{tpu_custom_call.1} parent=1 // pred_region
      %69 = vsyncadd [#allocation9], 0
      %s70 = sshll.u32 %s5, 4
      %s71 = int_to_ptr.hbm [resolvable:$true] %s70
      %s72 = sshll.u32 [#allocation10], 4
      %s73 = int_to_ptr.vmem [resolvable:$true] %s72
      %78 = dma.hbm_to_vmem [thread:$0]  %s71, 2048, %s73, [#allocation9], 128, 128, 8
    $region25: #{tpu_custom_call.1} parent=1 // pred_fallthru
      _
    // Predicated region
    $region26: #{tpu_custom_call.1} parent=1 // pred_check
      _
    $region27: #{tpu_custom_call.1} parent=1 // pred_check_branch
      %80 = sbr.rel (0) target = $region29
    $region28: #{tpu_custom_call.1} parent=1 // pred_region
      _
    $region29: #{tpu_custom_call.1} parent=1 // pred_fallthru
      _
    // Predicated region
    $region30: #{tpu_custom_call.1} parent=1 // pred_check
      _
    $region31: #{tpu_custom_call.1} parent=1 // pred_check_branch
      %82 = sbr.rel (0) target = $region33
    $region32: #{tpu_custom_call.1} parent=1 // pred_region
      %84 = dma.done [#allocation3], 128
    $region33: #{tpu_custom_call.1} parent=1 // pred_fallthru
      _
    // Predicated region
    $region34: #{tpu_custom_call.1} parent=1 // pred_check
      _
    $region35: #{tpu_custom_call.1} parent=1 // pred_check_branch
      %86 = sbr.rel (0) target = $region37
    $region36: #{tpu_custom_call.1} parent=1 // pred_region
      %88 = dma.done [#allocation6], 128
    $region37: #{tpu_custom_call.1} parent=1 // pred_fallthru
      _
    // Predicated region
    $region38: #{tpu_custom_call.1} parent=1 // pred_check
      _
    $region39: #{tpu_custom_call.1} parent=1 // pred_check_branch
      %90 = sbr.rel (0) target = $region41
    $region40: #{tpu_custom_call.1} parent=1 // pred_region
      %92 = dma.done [#allocation6], 768
    $region41: #{tpu_custom_call.1} parent=1 // pred_fallthru
      _
    // Predicated region
    $region42: #{tpu_custom_call.1} parent=1 // pred_check
      _
    $region43: #{tpu_custom_call.1} parent=1 // pred_check_branch
      %94 = sbr.rel (0) target = $region45
    $region44: #{tpu_custom_call.1} parent=1 // pred_region
      %96 = dma.done [#allocation9], 512
    $region45: #{tpu_custom_call.1} parent=1 // pred_fallthru
      _
    // Predicated region
    $region46: #{tpu_custom_call.1} parent=1 // pred_check
      _
    $region47: #{tpu_custom_call.1} parent=1 // pred_check_branch
      %98 = sbr.rel (0) target = $region49
    $region48: #{tpu_custom_call.1} parent=1 // pred_region
      %100 = dma.done [#allocation9], 2048
    $region49: #{tpu_custom_call.1} parent=1 // pred_fallthru
      _
    %v101 = vld [vmem:[#allocation2] sm:$0xff]
    %v102 = vld [vmem:[#allocation7] sm:$0xff]
    %v103 = vld [vmem:[#allocation7 + $0x8] sm:$0xff]
    %v104 = vld [vmem:[#allocation7 + $0x10] sm:$0xff]
    %v105 = vld [vmem:[#allocation7 + $0x18] sm:$0xff]
    %v106 = vld [vmem:[#allocation7 + $0x20] sm:$0xff]
    %v107 = vld [vmem:[#allocation7 + $0x28] sm:$0xff]
    %v108 = vld [vmem:[#allocation5] sm:$0xff]
    %v109 = vld [vmem:[#allocation8] sm:$0xff]
    %v110 = vld [vmem:[#allocation8 + $0x8] sm:$0xff]
    %v111 = vld [vmem:[#allocation8 + $0x10] sm:$0xff]
    %v112 = vld [vmem:[#allocation8 + $0x18] sm:$0xff]
    %vm113 = vcmask 261120
    %v115 = vsel %vm113, %v108, 0
    %117 = vmatpush.msra.mxu0 0.0
    %118 = vmatpush.msra.mxu0 0.0
    %119 = vmatpush.msra.mxu0 0.0
    %120 = vmatpush.msra.mxu0 0.0
    %121 = vmatpush.msra.mxu0 0.0
    %122 = vmatpush.msra.mxu0 0.0
    %123 = vmatpush.msra.mxu0 0.0
    %124 = vmatpush.msra.mxu0 0.0
    %125 = vmatpush.msra.mxu0 0.0
    %126 = vmatpush.msra.mxu0 0.0
    %127 = vmatpush.msra.mxu0 0.0
    %128 = vmatpush.msra.mxu0 0.0
    %129 = vmatpush.msra.mxu0 %v112
    %130 = vmatpush.msra.mxu0 %v111
    %131 = vmatpush.msra.mxu0 %v110
    %132 = vmatpush.msra.mxu0 %v109
    %133 = vmatmul.f32.gmra.mxu0 %v115
    %v134 = vpop.f32.mrf.mxu0
    %v135 = vadd.f32 0.0, %v134
    %136 = vdwg.mxu0
    %vm137 = vcmask 392192
    %v139 = vsel %vm137, %v101, 0
    %141 = vmatpush.msra.mxu0 0.0
    %142 = vmatpush.msra.mxu0 0.0
    %143 = vmatpush.msra.mxu0 0.0
    %144 = vmatpush.msra.mxu0 0.0
    %145 = vmatpush.msra.mxu0 0.0
    %146 = vmatpush.msra.mxu0 0.0
    %147 = vmatpush.msra.mxu0 0.0
    %148 = vmatpush.msra.mxu0 0.0
    %149 = vmatpush.msra.mxu0 0.0
    %150 = vmatpush.msra.mxu0 0.0
    %151 = vmatpush.msra.mxu0 %v107
    %152 = vmatpush.msra.mxu0 %v106
    %153 = vmatpush.msra.mxu0 %v105
    %154 = vmatpush.msra.mxu0 %v104
    %155 = vmatpush.msra.mxu0 %v103
    %156 = vmatpush.msra.mxu0 %v102
    %157 = vmatmul.f32.gmra.mxu0 %v139
    %v158 = vpop.f32.mrf.mxu0
    %v159 = vadd.f32 %v135, %v158
    %160 = vdwg.mxu0
    %v161 = vld [vmem:[%s4] sm:$0x1]
    %v163 = vperm.slane %v161, 0
    %v165 = vadd.f32 %v159, %v163
    %v166 = vmax.f32 %v165, 0.0
    %v167 = vld [vmem:[#allocation10] sm:$0xff]
    %v168 = vld [vmem:[#allocation10 + $0x8] sm:$0xff]
    %v169 = vld [vmem:[#allocation10 + $0x10] sm:$0xff]
    %v170 = vld [vmem:[#allocation10 + $0x18] sm:$0xff]
    %v171 = vld [vmem:[#allocation10 + $0x20] sm:$0xff]
    %v172 = vld [vmem:[#allocation10 + $0x28] sm:$0xff]
    %v173 = vld [vmem:[#allocation10 + $0x30] sm:$0xff]
    %v174 = vld [vmem:[#allocation10 + $0x38] sm:$0xff]
    %v175 = vld [vmem:[#allocation10 + $0x40] sm:$0xff]
    %v176 = vld [vmem:[#allocation10 + $0x48] sm:$0xff]
    %v177 = vld [vmem:[#allocation10 + $0x50] sm:$0xff]
    %v178 = vld [vmem:[#allocation10 + $0x58] sm:$0xff]
    %v179 = vld [vmem:[#allocation10 + $0x60] sm:$0xff]
    %v180 = vld [vmem:[#allocation10 + $0x68] sm:$0xff]
    %v181 = vld [vmem:[#allocation10 + $0x70] sm:$0xff]
    %v182 = vld [vmem:[#allocation10 + $0x78] sm:$0xff]
    %v183 = vld [vmem:[%s6] sm:$0x1]
    %v185 = vperm.slane %v183, 0
    %187 = vmatpush.msra.mxu0 %v182
    %188 = vmatpush.msra.mxu0 %v181
    %189 = vmatpush.msra.mxu0 %v180
    %190 = vmatpush.msra.mxu0 %v179
    %191 = vmatpush.msra.mxu0 %v178
    %192 = vmatpush.msra.mxu0 %v177
    %193 = vmatpush.msra.mxu0 %v176
    %194 = vmatpush.msra.mxu0 %v175
    %195 = vmatpush.msra.mxu0 %v174
    %196 = vmatpush.msra.mxu0 %v173
    %197 = vmatpush.msra.mxu0 %v172
    %198 = vmatpush.msra.mxu0 %v171
    %199 = vmatpush.msra.mxu0 %v170
    %200 = vmatpush.msra.mxu0 %v169
    %201 = vmatpush.msra.mxu0 %v168
    %202 = vmatpush.msra.mxu0 %v167
    %203 = vmatmul.f32.gmra.mxu0 %v166
    %v204 = vpop.f32.mrf.mxu0
    %v205 = vadd.f32 %v185, %v204
    %206 = vdwg.mxu0
    %207 = vst [vmem:[#allocation11] sm:$0xff] %v205
    // Predicated region
    $region50: #{tpu_custom_call.1} parent=1 // pred_check
      _
    $region51: #{tpu_custom_call.1} parent=1 // pred_check_branch
      %209 = sbr.rel (0) target = $region53
    $region52: #{tpu_custom_call.1} parent=1 // pred_region
      %211 = vsyncadd [#allocation4], 0
      %s213 = sshll.u32 [#allocation11], 4
      %s214 = int_to_ptr.vmem [resolvable:$true] %s213
      %s215 = sshll.u32 %s7, 4
      %s216 = int_to_ptr.hbm [resolvable:$true] %s215
      %218 = dma.vmem_to_hbm [thread:$0]  %s214, 128, %s216, [#allocation4]
    $region53: #{tpu_custom_call.1} parent=1 // pred_fallthru
      _
    // Predicated region
    $region54: #{tpu_custom_call.1} parent=1 // pred_check
      _
    $region55: #{tpu_custom_call.1} parent=1 // pred_check_branch
      %220 = sbr.rel (0) target = $region57
    $region56: #{tpu_custom_call.1} parent=1 // pred_region
      %222 = dma.done [#allocation4], 128
    $region57: #{tpu_custom_call.1} parent=1 // pred_fallthru
      _
    %223 = vsyncpa [#allocation3], 1
    %224 = vsyncpa [#allocation6], 1
    %225 = vsyncpa [#allocation9], 1
    %226 = vsyncpa [#allocation4], 1

</llo_original>
